<compile_context>
chip_gen: v6e
topology: v6e:2x2x1
jax: 0.10.0
libtpu: 0.0.40
codegen_flags: <defaults>
</compile_context>

<pallas_src>
import functools

import jax
import jax.numpy as jnp
from jax.experimental import pallas as pl
from jax.experimental.pallas import tpu as pltpu

POWER = 2  # Normalize(power=2)


def _normalize_kernel(x_ref, o_ref, *, power):
    # x_ref / o_ref: (b_tile, C, HW) or (1, C, HW_TILE); reduction over axis 1.
    x = x_ref[...].astype(jnp.float32)
    if power == 2:
        ssq = jnp.sum(x * x, axis=1, keepdims=True)
        inv = jax.lax.rsqrt(ssq)  # EUP op; replaces sqrt + broadcast divide
        # No epsilon -- matches the PyTorch module exactly (all-zero channel
        # vectors produce NaN, same as torch).
        o_ref[...] = (x * inv).astype(o_ref.dtype)
    else:
        # General Lp path; `power` stays a Python int so negative inputs go
        # through integer_pow (matches torch integer .pow()).
        s = jnp.sum(x ** power, axis=1, keepdims=True)
        norm = s ** (1.0 / power)
        o_ref[...] = (x / norm).astype(o_ref.dtype)


def _round_up(a, m):
    return (a + m - 1) // m * m


def _vmem_budget():
    """(per-buffer tile byte cap, pallas vmem_limit_bytes), generation-aware."""
    try:
        vmem_cap = int(pltpu.get_tpu_info().vmem_capacity_bytes)
    except Exception:
        vmem_cap = 64 << 20  # unknown -> assume the smallest (v7x-sized) VMEM
    if vmem_cap <= (64 << 20):
        # v7x: 64 MiB VMEM per TensorCore -> smaller tiles, tighter limit.
        return 4 << 20, 32 << 20
    # v5e / v6e: 128 MiB physical VMEM.
    return 8 << 20, 48 << 20


def normalize(x, power=POWER, *, max_tile_bytes=None, vmem_limit_bytes=None):
    """L2-normalize over the channel dimension of an NCHW tensor."""
    B, C, H, W = x.shape
    HW = H * W
    xr = x.reshape(B, C, HW)
    itemsize = jnp.dtype(x.dtype).itemsize
    kernel = functools.partial(_normalize_kernel, power=power)

    default_tile, default_vmem = _vmem_budget()
    if max_tile_bytes is None:
        max_tile_bytes = default_tile
    if vmem_limit_bytes is None:
        vmem_limit_bytes = default_vmem

    # --- VMEM accounting ----------------------------------------------------
    # Sublane padding of the second-to-last dim (C): f32 -> 8, bf16 -> 16,
    # int8/fp8 -> 32.  Lane padding of the last dim: 128.
    c_pad = _round_up(C, max(8, 32 // itemsize))
    hw_pad = _round_up(HW, 128)
    # Sub-32-bit inputs are upcast to f32 inside the kernel; halve the tile
    # cap so the f32 temporaries fit alongside the pipeline buffers.
    tile_budget = max_tile_bytes // 2 if itemsize < 4 else max_tile_bytes
    row_bytes = c_pad * hw_pad * itemsize  # one VMEM-padded batch row

    if row_bytes <= tile_budget:
        # --- Batch-tiled path: block (b_tile, C, HW); contiguous HBM DMA. ---
        b_tile = max(1, min(B, tile_budget // row_bytes))
        grid = (pl.cdiv(B, b_tile),)  # partial last block handled by Pallas
        out = pl.pallas_call(
            kernel,
            out_shape=jax.ShapeDtypeStruct((B, C, HW), x.dtype),
            grid_spec=pltpu.PrefetchScalarGridSpec(
                num_scalar_prefetch=0,
                grid=grid,
                in_specs=[pl.BlockSpec((b_tile, C, HW), lambda i: (i, 0, 0))],
                out_specs=pl.BlockSpec((b_tile, C, HW), lambda i: (i, 0, 0)),
            ),
            compiler_params=pltpu.CompilerParams(
                dimension_semantics=("parallel",),
                vmem_limit_bytes=vmem_limit_bytes,
            ),
        )(xr)
    else:
        # --- Lane-tiled path: block (1, C, hw_tile), hw_tile multiple of 128.
        # cdiv grid + masked ragged edge; no divisor search (keeps tiles big
        # even for prime-ish HW -> stays near HBM roofline).
        max_lanes = max(128, (tile_budget // (c_pad * itemsize)) // 128 * 128)
        hw_tile = min(max_lanes, hw_pad)
        n_s = pl.cdiv(HW, hw_tile)
        out = pl.pallas_call(
            kernel,
            out_shape=jax.ShapeDtypeStruct((B, C, HW), x.dtype),
            grid_spec=pltpu.PrefetchScalarGridSpec(
                num_scalar_prefetch=0,
                grid=(B, n_s),
                in_specs=[pl.BlockSpec((1, C, hw_tile), lambda b, s: (b, 0, s))],
                out_specs=pl.BlockSpec((1, C, hw_tile), lambda b, s: (b, 0, s)),
            ),
            compiler_params=pltpu.CompilerParams(
                # Reduction is entirely in-block; both axes independent, so
                # v7x can shard grid steps across its 2 TensorCores.
                dimension_semantics=("parallel", "parallel"),
                vmem_limit_bytes=vmem_limit_bytes,
            ),
        )(xr)
    return out.reshape(B, C, H, W)


if __name__ == "__main__":
    def ref_normalize(x, power=POWER):
        xf = x.astype(jnp.float32)
        norm = jnp.power(jnp.sum(jnp.power(xf, power), axis=1, keepdims=True),
                         1.0 / power)
        return (xf / norm).astype(x.dtype)

    k1, k2, k3, k4 = jax.random.split(jax.random.PRNGKey(0), 4)

    # 1) Small NCHW shape consistent with the module (single-block batch path).
    x1 = jax.random.normal(k1, (2, 4, 16, 16), dtype=jnp.float32)
    out1 = jax.block_until_ready(normalize(x1))
    assert out1.shape == x1.shape
    assert jnp.allclose(out1, ref_normalize(x1), atol=1e-5, rtol=1e-5)

    # 2) Lane-tiled path with ragged HW (400 not a multiple of 128) and a
    #    partial last lane block (hw_tile=256 under the forced 8 KiB budget).
    x2 = jax.random.normal(k2, (2, 8, 20, 20), dtype=jnp.float32)
    out2 = jax.block_until_ready(normalize(x2, max_tile_bytes=8 * 1024))
    assert out2.shape == x2.shape
    assert jnp.allclose(out2, ref_normalize(x2), atol=1e-5, rtol=1e-5)

    # 3) Batch-tiled path where b_tile (=3) does not divide B (=8): exercises
    #    the partial trailing batch block.
    x3 = jax.random.normal(k3, (8, 4, 8, 8), dtype=jnp.float32)
    out3 = jax.block_until_ready(normalize(x3, max_tile_bytes=12 * 1024))
    assert out3.shape == x3.shape
    assert jnp.allclose(out3, ref_normalize(x3), atol=1e-5, rtol=1e-5)

    # 4) bf16 input: exercises the in-kernel f32 upcast and the halved tile cap.
    x4 = jax.random.normal(k4, (2, 3, 16, 16), dtype=jnp.float32).astype(jnp.bfloat16)
    out4 = jax.block_until_ready(normalize(x4))
    assert out4.dtype == jnp.bfloat16
    assert jnp.allclose(out4.astype(jnp.float32),
                        ref_normalize(x4).astype(jnp.float32),
                        atol=2e-2, rtol=2e-2)

    print("KERNEL_OK")
</pallas_src>

<mosaic_0001>
module attributes {stable_mosaic.version = 11 : i64} {
  func.func @_normalize_kernel(%arg0: i32, %arg1: memref<2x4x256xf32, #tpu.memory_space<vmem>>, %arg2: memref<2x4x256xf32, #tpu.memory_space<vmem>>) attributes {dimension_semantics = [#tpu.dimension_semantics<parallel>], iteration_bounds = array<i64: 1>, scalar_prefetch = 0 : i64, scratch_operands = 0 : i64, tpu.core_type = #tpu.core_type<tc>, window_params = [{transform_indices = @transform_0, window_bounds = array<i64: 2, 4, 256>}, {transform_indices = @transform_1, window_bounds = array<i64: 2, 4, 256>}]} {
    %c0 = arith.constant 0 : index
    %c0_0 = arith.constant 0 : index
    %c0_1 = arith.constant 0 : index
    %0 = vector.load %arg1[%c0, %c0_0, %c0_1] : memref<2x4x256xf32, #tpu.memory_space<vmem>>, vector<2x4x256xf32>
    %1 = arith.mulf %0, %0 : vector<2x4x256xf32>
    %cst = arith.constant dense<0.000000e+00> : vector<2x256xf32>
    %2 = vector.multi_reduction <add>, %1, %cst [1] : vector<2x4x256xf32> to vector<2x256xf32>
    %3 = vector.shape_cast %2 : vector<2x256xf32> to vector<2x1x256xf32>
    %4 = math.rsqrt %3 : vector<2x1x256xf32>
    %5 = vector.broadcast %4 : vector<2x1x256xf32> to vector<2x4x256xf32>
    %6 = arith.mulf %0, %5 : vector<2x4x256xf32>
    %c0_2 = arith.constant 0 : index
    %c0_3 = arith.constant 0 : index
    %c0_4 = arith.constant 0 : index
    %7 = vector.load %arg2[%c0_2, %c0_3, %c0_4] : memref<2x4x256xf32, #tpu.memory_space<vmem>>, vector<2x4x256xf32>
    tpu.vector_store %arg2[%c0_2, %c0_3, %c0_4], %6 {strides = array<i32>} : memref<2x4x256xf32, #tpu.memory_space<vmem>>, vector<2x4x256xf32>,
    return
  }
  func.func @transform_0(%arg0: i32) -> (i32, i32, i32) {
    %c0_i32 = arith.constant 0 : i32
    %c0_i32_0 = arith.constant 0 : i32
    %c0_i32_1 = arith.constant 0 : i32
    return %arg0, %c0_i32, %c0_i32_0 : i32, i32, i32
  }
  func.func @transform_1(%arg0: i32) -> (i32, i32, i32) {
    %c0_i32 = arith.constant 0 : i32
    %c0_i32_0 = arith.constant 0 : i32
    %c0_i32_1 = arith.constant 0 : i32
    return %arg0, %c0_i32, %c0_i32_0 : i32, i32, i32
  }
}

</mosaic_0001>

<llo_original>
// kernel: tpu_custom_call.1
$region0: #{tpu_custom_call.1}
  #allocation0 [shape = 'u32[]', space=smem, size = 0x4, offset = 0x4, fixed_abs, tag = 'smem constant byte address 0x4 - core index']
  #allocation1 [shape = 'u32[144,128]{1,0:T(1,128)}', space=vmem, size = 0x12000, scoped, tag = 'internal scratch']
  %s0 = inlined_call_operand.hbm [shape: f32[2,4,256], index: 0, kind: input, shape index: {}]
  %s1 = inlined_call_operand.hbm [shape: f32[2,4,256], index: 1, kind: output, shape index: {}]
  %s2 = sld [smem:[#allocation0]]
  $region18: #{tpu_custom_call.1} parent=0
    _
  %s4 = ssub.s32 1, %s2
  %s5 = scalar_select 0, %s4, %s2
  $region1: #{tpu_custom_call.1} parent=0
    #allocation2 [shape = 'u8[8192]{0}', space=vmem, size = 0x2000, scoped, tag = 'input window, operand 0, single buffered']
    #allocation3 [shape = 's32[1]{0}', space=sflag, size = 0x4, scoped, tag = 'scoped memory for tpu_custom_call.1']
    #allocation4 [shape = 's32[1]{0}', space=sflag, size = 0x4, scoped, tag = 'scoped memory for tpu_custom_call.1']
    #allocation5 [shape = 'u8[8192]{0}', space=vmem, size = 0x2000, scoped, tag = 'output window, operand 0, single buffered']
    %6 = vsyncpa [#allocation3], 0
    %7 = vsyncpa [#allocation4], 0
    // Predicated region
    $region2: #{tpu_custom_call.1} parent=1 // pred_check
      _
    $region3: #{tpu_custom_call.1} parent=1 // pred_check_branch
      %9 = sbr.rel (0) target = $region5
    $region4: #{tpu_custom_call.1} parent=1 // pred_region
      %s11 = ssub.s32 256, 256
      %12 = vsyncadd [#allocation3], %s11
      %s13 = sshll.u32 [#allocation2], 4
      %s14 = int_to_ptr.vmem [resolvable:$true] %s13
      %19 = dma.hbm_to_vmem [thread:$0]  %s0, 256, %s14, [#allocation3], 128, 128, 8
    $region5: #{tpu_custom_call.1} parent=1 // pred_fallthru
      _
    // Predicated region
    $region6: #{tpu_custom_call.1} parent=1 // pred_check
      _
    $region7: #{tpu_custom_call.1} parent=1 // pred_check_branch
      %21 = sbr.rel (0) target = $region9
    $region8: #{tpu_custom_call.1} parent=1 // pred_region
      %22 = dma.done [#allocation3], 256
    $region9: #{tpu_custom_call.1} parent=1 // pred_fallthru
      _
    %v23 = vld [vmem:[#allocation2] sm:$0xff]
    %v24 = vld [vmem:[#allocation2 + $0x8] sm:$0xff]
    %v25 = vmul.f32 %v23, %v23
    %v26 = vmul.f32 %v24, %v24
    %v29 = vcombine.high %v25, %v25
    %v30 = vcombine.high %v26, %v26
    %vm33 = vcmask 1043456
    %v34 = vsel %vm33, %v25, 0.0
    %v35 = vrot.slane %v34, 4
    %v36 = vadd.f32 %v34, %v35
    %v37 = vrot.slane %v36, 2
    %v38 = vadd.f32 %v36, %v37
    %v39 = vrot.slane %v38, 1
    %v40 = vadd.f32 %v38, %v39
    %v41 = vsel %vm33, %v29, 0.0
    %v42 = vrot.slane %v41, 4
    %v43 = vadd.f32 %v41, %v42
    %v44 = vrot.slane %v43, 2
    %v45 = vadd.f32 %v43, %v44
    %v46 = vrot.slane %v45, 1
    %v47 = vadd.f32 %v45, %v46
    %v48 = vsel %vm33, %v26, 0.0
    %v49 = vrot.slane %v48, 4
    %v50 = vadd.f32 %v48, %v49
    %v51 = vrot.slane %v50, 2
    %v52 = vadd.f32 %v50, %v51
    %v53 = vrot.slane %v52, 1
    %v54 = vadd.f32 %v52, %v53
    %v55 = vsel %vm33, %v30, 0.0
    %v56 = vrot.slane %v55, 4
    %v57 = vadd.f32 %v55, %v56
    %v58 = vrot.slane %v57, 2
    %v59 = vadd.f32 %v57, %v58
    %v60 = vrot.slane %v59, 1
    %v61 = vadd.f32 %v59, %v60
    %v62 = vrsqrt.pop %v40
    %v63 = vrsqrt.pop %v47
    %v64 = vrsqrt.pop %v54
    %v65 = vrsqrt.pop %v61
    %v70 = vcombine.low %v62, %v63
    %v71 = vcombine.low %v64, %v65
    %v74 = vmul.f32 %v23, %v70
    %v75 = vmul.f32 %v24, %v71
    %76 = vst [vmem:[#allocation5] sm:$0xff] %v74
    %77 = vst [vmem:[#allocation5 + $0x8] sm:$0xff] %v75
    // Predicated region
    $region10: #{tpu_custom_call.1} parent=1 // pred_check
      _
    $region11: #{tpu_custom_call.1} parent=1 // pred_check_branch
      %79 = sbr.rel (0) target = $region13
    $region12: #{tpu_custom_call.1} parent=1 // pred_region
      %s81 = ssub.s32 256, 256
      %82 = vsyncadd [#allocation4], %s81
      %s83 = sshll.u32 [#allocation5], 4
      %s84 = int_to_ptr.vmem [resolvable:$true] %s83
      %89 = dma.vmem_to_hbm [thread:$0]  %s84, 256, %s1, [#allocation4], 128, 128, 8
    $region13: #{tpu_custom_call.1} parent=1 // pred_fallthru
      _
    // Predicated region
    $region14: #{tpu_custom_call.1} parent=1 // pred_check
      _
    $region15: #{tpu_custom_call.1} parent=1 // pred_check_branch
      %91 = sbr.rel (0) target = $region17
    $region16: #{tpu_custom_call.1} parent=1 // pred_region
      %92 = dma.done [#allocation4], 256
    $region17: #{tpu_custom_call.1} parent=1 // pred_fallthru
      _
    %93 = vsyncpa [#allocation3], 1
    %94 = vsyncpa [#allocation4], 1

</llo_original>
